<compile_context>
chip_gen: v7x
topology: tpu7x:2x2x1
jax: 0.10.0
libtpu: 0.0.40
codegen_flags: <defaults>
</compile_context>

<pallas_src>
import jax
import jax.numpy as jnp
from jax.experimental import pallas as pl
from jax.experimental.pallas import tpu as pltpu


def _round_up(n, m):
    return ((n + m - 1) // m) * m


def _mlp_kernel(b4_ref,            # SMEM (1, 1): folded final bias  (b4 / T)
                x_ref,             # VMEM (TILE_B, D)
                w1_ref, b1_ref,    # VMEM (D, H1), (1, H1)   (BN folded in)
                w2_ref, b2_ref,    # VMEM (H1, H2), (1, H2)
                w3_ref, b3_ref,    # VMEM (H2, H3), (1, H3)
                w4_ref,            # VMEM (1, H3)            (1/T folded in)
                out_ref):          # VMEM (1, TILE_B)
    """Fused: 3x (Linear+BN(eval)+ReLU) + Linear(1) + temperature + sigmoid."""
    x = x_ref[...]  # already f32

    # Hidden block 1..3: dot + bias + ReLU.  Dropout = identity at inference.
    # TODO(synk): training-mode Dropout(0.3) / batch-stat BatchNorm not modeled.
    h = jnp.dot(x, w1_ref[...], preferred_element_type=jnp.float32) + b1_ref[...]
    h = jnp.maximum(h, 0.0)
    h = jnp.dot(h, w2_ref[...], preferred_element_type=jnp.float32) + b2_ref[...]
    h = jnp.maximum(h, 0.0)
    h = jnp.dot(h, w3_ref[...], preferred_element_type=jnp.float32) + b3_ref[...]
    h = jnp.maximum(h, 0.0)

    # Final Linear(H3 -> 1), computed transposed so the result lands lane-dense:
    #   (1, H3) @ (H3, TILE_B) -> (1, TILE_B).
    logits = jnp.dot(w4_ref[...], h.T, preferred_element_type=jnp.float32)
    logits = logits + b4_ref[0, 0]

    # Temperature already folded into w4/b4; sigmoid runs on the EUP.
    out_ref[...] = jax.nn.sigmoid(logits)


def temperature_scaled_forward(x, params, temperature, *, tile_b=None):
    """Run the fused Pallas kernel.  Returns probabilities of shape (B, 1).

    params: dict with keys w1..w4, b1..b4, bn{1,2,3}_{gamma,beta,mean,var}.
    """
    B, D = x.shape
    eps = 1e-5

    # --- Host-side folding -------------------------------------------------
    def fold_bn_into_linear(w, b, gamma, beta, mean, var):
        scale = gamma / jnp.sqrt(var + eps)           # (d_out,)
        shift = beta - mean * scale                   # (d_out,)
        return w * scale[None, :], (b * scale + shift)[None, :]

    w1, b1 = fold_bn_into_linear(params["w1"], params["b1"],
                                 params["bn1_gamma"], params["bn1_beta"],
                                 params["bn1_mean"], params["bn1_var"])
    w2, b2 = fold_bn_into_linear(params["w2"], params["b2"],
                                 params["bn2_gamma"], params["bn2_beta"],
                                 params["bn2_mean"], params["bn2_var"])
    w3, b3 = fold_bn_into_linear(params["w3"], params["b3"],
                                 params["bn3_gamma"], params["bn3_beta"],
                                 params["bn3_mean"], params["bn3_var"])

    inv_t = 1.0 / jnp.asarray(temperature, jnp.float32).reshape(())
    w4_row = (params["w4"] * inv_t).T                 # (1, H3)
    b4 = (params["b4"] * inv_t).reshape(1, 1)         # (1, 1) SMEM scalar

    H1, H2, H3 = w1.shape[1], w2.shape[1], w3.shape[1]

    # --- Batch tiling ------------------------------------------------------
    if tile_b is None:
        # Big lane/sublane-aligned tile; multi-tile tiles are multiples of 128.
        tile_b = min(1024, _round_up(B, 8))
    b_pad = _round_up(B, tile_b)
    num_tiles = b_pad // tile_b
    if b_pad != B:
        x = jnp.pad(x, ((0, b_pad - B), (0, 0)))

    const2 = lambda i: (0, 0)  # weights/biases: VMEM-resident across grid steps

    out2d = pl.pallas_call(
        _mlp_kernel,
        out_shape=jax.ShapeDtypeStruct((num_tiles, tile_b), jnp.float32),
        grid=(num_tiles,),
        in_specs=[
            pl.BlockSpec((1, 1), const2, memory_space=pltpu.SMEM),   # b4
            pl.BlockSpec((tile_b, D), lambda i: (i, 0)),             # x tile
            pl.BlockSpec((D, H1), const2), pl.BlockSpec((1, H1), const2),
            pl.BlockSpec((H1, H2), const2), pl.BlockSpec((1, H2), const2),
            pl.BlockSpec((H2, H3), const2), pl.BlockSpec((1, H3), const2),
            pl.BlockSpec((1, H3), const2),                           # w4 row
        ],
        out_specs=pl.BlockSpec((1, tile_b), lambda i: (i, 0)),       # lane-dense
        compiler_params=pltpu.CompilerParams(
            dimension_semantics=("parallel",)),
    )(b4, x, w1, b1, w2, b2, w3, b3, w4_row)

    # (num_tiles, tile_b) -> (B, 1), dropping batch padding.
    return out2d.reshape(-1)[:B].reshape(B, 1)


def init_params(key, input_dim, hidden_dims=(128, 64, 32)):
    """Deterministic synthetic parameters (PyTorch-like, stored transposed)."""
    params = {}
    dims = [input_dim] + list(hidden_dims)
    keys = jax.random.split(key, 2 * (len(hidden_dims) + 1) + len(hidden_dims) * 2)
    ki = 0
    for i, (d_in, d_out) in enumerate(zip(dims[:-1], dims[1:]), start=1):
        params[f"w{i}"] = (jax.random.normal(keys[ki], (d_in, d_out), jnp.float32)
                           / jnp.sqrt(d_in)); ki += 1
        params[f"b{i}"] = jax.random.normal(keys[ki], (d_out,), jnp.float32) * 0.01; ki += 1
        # BatchNorm1d inference-mode running stats (slightly perturbed gamma/beta).
        params[f"bn{i}_gamma"] = 1.0 + 0.1 * jax.random.normal(keys[ki], (d_out,), jnp.float32); ki += 1
        params[f"bn{i}_beta"] = 0.05 * jax.random.normal(keys[ki], (d_out,), jnp.float32); ki += 1
        params[f"bn{i}_mean"] = jnp.zeros((d_out,), jnp.float32)
        params[f"bn{i}_var"] = jnp.ones((d_out,), jnp.float32)
    d_in = dims[-1]
    params["w4"] = jax.random.normal(keys[ki], (d_in, 1), jnp.float32) / jnp.sqrt(d_in); ki += 1
    params["b4"] = jax.random.normal(keys[ki], (1,), jnp.float32) * 0.01; ki += 1
    return params


def reference_forward(x, params, temperature):
    """Plain-JAX reference (unfolded math) for sanity checking."""
    eps = 1e-5
    h = x
    for i in range(1, 4):
        h = h @ params[f"w{i}"] + params[f"b{i}"]
        scale = params[f"bn{i}_gamma"] / jnp.sqrt(params[f"bn{i}_var"] + eps)
        shift = params[f"bn{i}_beta"] - params[f"bn{i}_mean"] * scale
        h = h * scale + shift
        h = jnp.maximum(h, 0.0)
    logits = h @ params["w4"] + params["b4"]
    return jax.nn.sigmoid(logits / temperature)


if __name__ == "__main__":
    key = jax.random.PRNGKey(0)
    k_param, k_x, k_x2 = jax.random.split(key, 3)

    input_dim = 32
    params = init_params(k_param, input_dim)
    temperature = jnp.float32(1.5)  # default nn.Parameter is 1.0; 1.5 exercises scaling

    # Case 1: small batch, single tile.
    batch = 8
    x = jax.random.normal(k_x, (batch, input_dim), jnp.float32)
    out = jax.block_until_ready(temperature_scaled_forward(x, params, temperature))
    ref = reference_forward(x, params, temperature)
    assert out.shape == (batch, 1), out.shape
    # Folded-weight arithmetic differs from the reference by a few f32 ulps.
    assert jnp.allclose(out, ref, atol=1e-4, rtol=1e-4), (out, ref)

    # Case 2: non-multiple batch with explicit tile -> multi-step grid, padding,
    # lane-dense (1, 128) output stores.
    batch2 = 300
    x2 = jax.random.normal(k_x2, (batch2, input_dim), jnp.float32)
    out2 = jax.block_until_ready(
        temperature_scaled_forward(x2, params, temperature, tile_b=128))
    ref2 = reference_forward(x2, params, temperature)
    assert out2.shape == (batch2, 1), out2.shape
    assert jnp.allclose(out2, ref2, atol=1e-4, rtol=1e-4)

    print("KERNEL_OK")
</pallas_src>

<mosaic_0001>
module attributes {stable_mosaic.version = 11 : i64} {
  func.func @_mlp_kernel(%arg0: i32, %arg1: memref<1x1xf32, #tpu.memory_space<smem>>, %arg2: memref<8x32xf32, #tpu.memory_space<vmem>>, %arg3: memref<32x128xf32, #tpu.memory_space<vmem>>, %arg4: memref<1x128xf32, #tpu.memory_space<vmem>>, %arg5: memref<128x64xf32, #tpu.memory_space<vmem>>, %arg6: memref<1x64xf32, #tpu.memory_space<vmem>>, %arg7: memref<64x32xf32, #tpu.memory_space<vmem>>, %arg8: memref<1x32xf32, #tpu.memory_space<vmem>>, %arg9: memref<1x32xf32, #tpu.memory_space<vmem>>, %arg10: memref<1x8xf32, #tpu.memory_space<vmem>>) attributes {dimension_semantics = [#tpu.dimension_semantics<parallel>], iteration_bounds = array<i64: 1>, scalar_prefetch = 0 : i64, scratch_operands = 0 : i64, tpu.core_type = #tpu.core_type<tc>, window_params = [{transform_indices = @transform_0, window_bounds = array<i64: 1, 1>}, {transform_indices = @transform_1, window_bounds = array<i64: 8, 32>}, {pipeline_mode = #tpu.pipeline_mode<synchronous>, transform_indices = @transform_2, window_bounds = array<i64: 32, 128>}, {pipeline_mode = #tpu.pipeline_mode<synchronous>, transform_indices = @transform_3, window_bounds = array<i64: 1, 128>}, {pipeline_mode = #tpu.pipeline_mode<synchronous>, transform_indices = @transform_4, window_bounds = array<i64: 128, 64>}, {pipeline_mode = #tpu.pipeline_mode<synchronous>, transform_indices = @transform_5, window_bounds = array<i64: 1, 64>}, {pipeline_mode = #tpu.pipeline_mode<synchronous>, transform_indices = @transform_6, window_bounds = array<i64: 64, 32>}, {pipeline_mode = #tpu.pipeline_mode<synchronous>, transform_indices = @transform_7, window_bounds = array<i64: 1, 32>}, {pipeline_mode = #tpu.pipeline_mode<synchronous>, transform_indices = @transform_8, window_bounds = array<i64: 1, 32>}, {transform_indices = @transform_9, window_bounds = array<i64: 1, 8>}]} {
    %c0 = arith.constant 0 : index
    %c0_0 = arith.constant 0 : index
    %0 = vector.load %arg2[%c0, %c0_0] : memref<8x32xf32, #tpu.memory_space<vmem>>, vector<8x32xf32>
    %c0_1 = arith.constant 0 : index
    %c0_2 = arith.constant 0 : index
    %1 = vector.load %arg3[%c0_1, %c0_2] : memref<32x128xf32, #tpu.memory_space<vmem>>, vector<32x128xf32>
    %cst = arith.constant dense<0.000000e+00> : vector<8x128xf32>
    %2 = tpu.matmul %0, %1, %cst {dimension_numbers = #tpu.dot_dimension_numbers<[1], [0], [0], [1], [0, 0, 1, 1], [], []>} : vector<8x32xf32>, vector<32x128xf32>, vector<8x128xf32> -> vector<8x128xf32>
    %c0_3 = arith.constant 0 : index
    %c0_4 = arith.constant 0 : index
    %3 = vector.load %arg4[%c0_3, %c0_4] : memref<1x128xf32, #tpu.memory_space<vmem>>, vector<1x128xf32>
    %4 = vector.broadcast %3 : vector<1x128xf32> to vector<8x128xf32>
    %5 = arith.addf %2, %4 : vector<8x128xf32>
    %cst_5 = arith.constant 0.000000e+00 : f32
    %6 = vector.broadcast %cst_5 : f32 to vector<8x128xf32>
    %7 = arith.maximumf %5, %6 : vector<8x128xf32>
    %c0_6 = arith.constant 0 : index
    %c0_7 = arith.constant 0 : index
    %8 = vector.load %arg5[%c0_6, %c0_7] : memref<128x64xf32, #tpu.memory_space<vmem>>, vector<128x64xf32>
    %cst_8 = arith.constant dense<0.000000e+00> : vector<8x64xf32>
    %9 = tpu.matmul %7, %8, %cst_8 {dimension_numbers = #tpu.dot_dimension_numbers<[1], [0], [0], [1], [0, 0, 1, 1], [], []>} : vector<8x128xf32>, vector<128x64xf32>, vector<8x64xf32> -> vector<8x64xf32>
    %c0_9 = arith.constant 0 : index
    %c0_10 = arith.constant 0 : index
    %10 = vector.load %arg6[%c0_9, %c0_10] : memref<1x64xf32, #tpu.memory_space<vmem>>, vector<1x64xf32>
    %11 = vector.broadcast %10 : vector<1x64xf32> to vector<8x64xf32>
    %12 = arith.addf %9, %11 : vector<8x64xf32>
    %cst_11 = arith.constant 0.000000e+00 : f32
    %13 = vector.broadcast %cst_11 : f32 to vector<8x64xf32>
    %14 = arith.maximumf %12, %13 : vector<8x64xf32>
    %c0_12 = arith.constant 0 : index
    %c0_13 = arith.constant 0 : index
    %15 = vector.load %arg7[%c0_12, %c0_13] : memref<64x32xf32, #tpu.memory_space<vmem>>, vector<64x32xf32>
    %cst_14 = arith.constant dense<0.000000e+00> : vector<8x32xf32>
    %16 = tpu.matmul %14, %15, %cst_14 {dimension_numbers = #tpu.dot_dimension_numbers<[1], [0], [0], [1], [0, 0, 1, 1], [], []>} : vector<8x64xf32>, vector<64x32xf32>, vector<8x32xf32> -> vector<8x32xf32>
    %c0_15 = arith.constant 0 : index
    %c0_16 = arith.constant 0 : index
    %17 = vector.load %arg8[%c0_15, %c0_16] : memref<1x32xf32, #tpu.memory_space<vmem>>, vector<1x32xf32>
    %18 = vector.broadcast %17 : vector<1x32xf32> to vector<8x32xf32>
    %19 = arith.addf %16, %18 : vector<8x32xf32>
    %cst_17 = arith.constant 0.000000e+00 : f32
    %20 = vector.broadcast %cst_17 : f32 to vector<8x32xf32>
    %21 = arith.maximumf %19, %20 : vector<8x32xf32>
    %c0_18 = arith.constant 0 : index
    %c0_19 = arith.constant 0 : index
    %22 = vector.load %arg9[%c0_18, %c0_19] : memref<1x32xf32, #tpu.memory_space<vmem>>, vector<1x32xf32>
    %23 = tpu.transpose %21, [1, 0] : vector<8x32xf32> -> vector<32x8xf32>
    %cst_20 = arith.constant dense<0.000000e+00> : vector<1x8xf32>
    %24 = tpu.matmul %22, %23, %cst_20 {dimension_numbers = #tpu.dot_dimension_numbers<[1], [0], [0], [1], [0, 0, 1, 1], [], []>} : vector<1x32xf32>, vector<32x8xf32>, vector<1x8xf32> -> vector<1x8xf32>
    %c0_21 = arith.constant 0 : index
    %c0_22 = arith.constant 0 : index
    %25 = memref.load %arg1[%c0_21, %c0_22] : memref<1x1xf32, #tpu.memory_space<smem>>
    %26 = vector.broadcast %25 : f32 to vector<1x8xf32>
    %27 = arith.addf %24, %26 : vector<1x8xf32>
    %28 = arith.negf %27 : vector<1x8xf32>
    %29 = math.exp %28 : vector<1x8xf32>
    %cst_23 = arith.constant 1.000000e+00 : f32
    %30 = vector.broadcast %cst_23 : f32 to vector<1x8xf32>
    %31 = arith.addf %30, %29 : vector<1x8xf32>
    %32 = arith.divf %30, %31 : vector<1x8xf32>
    %c0_24 = arith.constant 0 : index
    %c0_25 = arith.constant 0 : index
    %33 = vector.load %arg10[%c0_24, %c0_25] : memref<1x8xf32, #tpu.memory_space<vmem>>, vector<1x8xf32>
    tpu.vector_store %arg10[%c0_24, %c0_25], %32 {strides = array<i32>} : memref<1x8xf32, #tpu.memory_space<vmem>>, vector<1x8xf32>,
    return
  }
  func.func @transform_0(%arg0: i32) -> (i32, i32) {
    %c0_i32 = arith.constant 0 : i32
    %c0_i32_0 = arith.constant 0 : i32
    %c0_i32_1 = arith.constant 0 : i32
    return %c0_i32, %c0_i32_0 : i32, i32
  }
  func.func @transform_1(%arg0: i32) -> (i32, i32) {
    %c0_i32 = arith.constant 0 : i32
    %c0_i32_0 = arith.constant 0 : i32
    return %arg0, %c0_i32 : i32, i32
  }
  func.func @transform_2(%arg0: i32) -> (i32, i32) {
    %c0_i32 = arith.constant 0 : i32
    %c0_i32_0 = arith.constant 0 : i32
    %c0_i32_1 = arith.constant 0 : i32
    return %c0_i32, %c0_i32_0 : i32, i32
  }
  func.func @transform_3(%arg0: i32) -> (i32, i32) {
    %c0_i32 = arith.constant 0 : i32
    %c0_i32_0 = arith.constant 0 : i32
    %c0_i32_1 = arith.constant 0 : i32
    return %c0_i32, %c0_i32_0 : i32, i32
  }
  func.func @transform_4(%arg0: i32) -> (i32, i32) {
    %c0_i32 = arith.constant 0 : i32
    %c0_i32_0 = arith.constant 0 : i32
    %c0_i32_1 = arith.constant 0 : i32
    return %c0_i32, %c0_i32_0 : i32, i32
  }
  func.func @transform_5(%arg0: i32) -> (i32, i32) {
    %c0_i32 = arith.constant 0 : i32
    %c0_i32_0 = arith.constant 0 : i32
    %c0_i32_1 = arith.constant 0 : i32
    return %c0_i32, %c0_i32_0 : i32, i32
  }
  func.func @transform_6(%arg0: i32) -> (i32, i32) {
    %c0_i32 = arith.constant 0 : i32
    %c0_i32_0 = arith.constant 0 : i32
    %c0_i32_1 = arith.constant 0 : i32
    return %c0_i32, %c0_i32_0 : i32, i32
  }
  func.func @transform_7(%arg0: i32) -> (i32, i32) {
    %c0_i32 = arith.constant 0 : i32
    %c0_i32_0 = arith.constant 0 : i32
    %c0_i32_1 = arith.constant 0 : i32
    return %c0_i32, %c0_i32_0 : i32, i32
  }
  func.func @transform_8(%arg0: i32) -> (i32, i32) {
    %c0_i32 = arith.constant 0 : i32
    %c0_i32_0 = arith.constant 0 : i32
    %c0_i32_1 = arith.constant 0 : i32
    return %c0_i32, %c0_i32_0 : i32, i32
  }
  func.func @transform_9(%arg0: i32) -> (i32, i32) {
    %c0_i32 = arith.constant 0 : i32
    %c0_i32_0 = arith.constant 0 : i32
    return %arg0, %c0_i32 : i32, i32
  }
}

</mosaic_0001>

<llo_original>
// kernel: tpu_custom_call.1
$region0: #{tpu_custom_call.1}
  #allocation0 [shape = 'u32[]', space=smem, size = 0x4, offset = 0x4, fixed_abs, tag = 'smem constant byte address 0x4 - core index']
  #allocation1 [shape = 'u32[144,128]{1,0:T(1,128)}', space=vmem, size = 0x12000, scoped, tag = 'internal scratch']
  #allocation2 [shape = 'f32[1,1]{1,0:T(1,128)S(6)}', space=smem, size = 0x200, scoped, tag = 'scoped memory for tpu_custom_call.1']
  %s0 = inlined_call_operand.<no memory space> [shape: f32[1,1], index: 0, kind: input, shape index: {}]
  %s1 = inlined_call_operand.vmem [shape: f32[8,32], index: 1, kind: input, shape index: {}]
  %s2 = inlined_call_operand.vmem [shape: f32[32,128], index: 2, kind: input, shape index: {}]
  %s3 = inlined_call_operand.vmem [shape: f32[1,128], index: 3, kind: input, shape index: {}]
  %s4 = inlined_call_operand.vmem [shape: f32[128,64], index: 4, kind: input, shape index: {}]
  %s5 = inlined_call_operand.vmem [shape: f32[1,64], index: 5, kind: input, shape index: {}]
  %s6 = inlined_call_operand.vmem [shape: f32[64,32], index: 6, kind: input, shape index: {}]
  %s7 = inlined_call_operand.vmem [shape: f32[1,32], index: 7, kind: input, shape index: {}]
  %s8 = inlined_call_operand.vmem [shape: f32[1,32], index: 8, kind: input, shape index: {}]
  %s9 = inlined_call_operand.hbm [shape: f32[1,8], index: 9, kind: output, shape index: {}]
  %s10 = sld [smem:[#allocation0]]
  $region46: #{tpu_custom_call.1} parent=0
    _
  %s12 = ssub.s32 1, %s10
  %s13 = scalar_select 0, %s12, %s10
  %14 = sst [smem:[#allocation2]] %s0
  $region1: #{tpu_custom_call.1} parent=0
    #allocation3 [shape = 'u8[512]{0}', space=vmem, size = 0x400, scoped, tag = 'output window, operand 0, single buffered']
    #allocation4 [shape = 's32[1]{0}', space=sflag, size = 0x4, scoped, tag = 'scoped memory for tpu_custom_call.1']
    %15 = vsyncpa [#allocation4], 0
    // Predicated region
    $region2: #{tpu_custom_call.1} parent=1 // pred_check
      _
    $region3: #{tpu_custom_call.1} parent=1 // pred_check_branch
      %17 = sbr.rel (0) target = $region5
    $region4: #{tpu_custom_call.1} parent=1 // pred_region
      _
    $region5: #{tpu_custom_call.1} parent=1 // pred_fallthru
      _
    // Predicated region
    $region6: #{tpu_custom_call.1} parent=1 // pred_check
      _
    $region7: #{tpu_custom_call.1} parent=1 // pred_check_branch
      %19 = sbr.rel (0) target = $region9
    $region8: #{tpu_custom_call.1} parent=1 // pred_region
      _
    $region9: #{tpu_custom_call.1} parent=1 // pred_fallthru
      _
    // Predicated region
    $region10: #{tpu_custom_call.1} parent=1 // pred_check
      _
    $region11: #{tpu_custom_call.1} parent=1 // pred_check_branch
      %21 = sbr.rel (0) target = $region13
    $region12: #{tpu_custom_call.1} parent=1 // pred_region
      _
    $region13: #{tpu_custom_call.1} parent=1 // pred_fallthru
      _
    // Predicated region
    $region14: #{tpu_custom_call.1} parent=1 // pred_check
      _
    $region15: #{tpu_custom_call.1} parent=1 // pred_check_branch
      %23 = sbr.rel (0) target = $region17
    $region16: #{tpu_custom_call.1} parent=1 // pred_region
      _
    $region17: #{tpu_custom_call.1} parent=1 // pred_fallthru
      _
    // Predicated region
    $region18: #{tpu_custom_call.1} parent=1 // pred_check
      _
    $region19: #{tpu_custom_call.1} parent=1 // pred_check_branch
      %25 = sbr.rel (0) target = $region21
    $region20: #{tpu_custom_call.1} parent=1 // pred_region
      _
    $region21: #{tpu_custom_call.1} parent=1 // pred_fallthru
      _
    // Predicated region
    $region22: #{tpu_custom_call.1} parent=1 // pred_check
      _
    $region23: #{tpu_custom_call.1} parent=1 // pred_check_branch
      %27 = sbr.rel (0) target = $region25
    $region24: #{tpu_custom_call.1} parent=1 // pred_region
      _
    $region25: #{tpu_custom_call.1} parent=1 // pred_fallthru
      _
    // Predicated region
    $region26: #{tpu_custom_call.1} parent=1 // pred_check
      _
    $region27: #{tpu_custom_call.1} parent=1 // pred_check_branch
      %29 = sbr.rel (0) target = $region29
    $region28: #{tpu_custom_call.1} parent=1 // pred_region
      _
    $region29: #{tpu_custom_call.1} parent=1 // pred_fallthru
      _
    // Predicated region
    $region30: #{tpu_custom_call.1} parent=1 // pred_check
      _
    $region31: #{tpu_custom_call.1} parent=1 // pred_check_branch
      %31 = sbr.rel (0) target = $region33
    $region32: #{tpu_custom_call.1} parent=1 // pred_region
      _
    $region33: #{tpu_custom_call.1} parent=1 // pred_fallthru
      _
    // Predicated region
    $region34: #{tpu_custom_call.1} parent=1 // pred_check
      _
    $region35: #{tpu_custom_call.1} parent=1 // pred_check_branch
      %33 = sbr.rel (0) target = $region37
    $region36: #{tpu_custom_call.1} parent=1 // pred_region
      _
    $region37: #{tpu_custom_call.1} parent=1 // pred_fallthru
      _
    %v34 = vld [vmem:[%s1] sm:$0xff]
    %v35 = vld [vmem:[%s2] sm:$0xff]
    %v36 = vld [vmem:[%s2 + $0x8] sm:$0xff]
    %v37 = vld [vmem:[%s2 + $0x10] sm:$0xff]
    %v38 = vld [vmem:[%s2 + $0x18] sm:$0xff]
    %v39 = vld [vmem:[%s3] sm:$0x1]
    %v41 = vlaneseq
    %v42 = vshrl.u32 %v41, 7
    %v43 = vsub.s32 0, %v42
    %v44 = vrot.slane %v39, %v43
    %vm46 = vcmask 261120
    %v48 = vsel %vm46, %v34, 0
    %50 = vmatprep.subr.mxu0 0.0
    %51 = vmatpush1.msra.mxu0 %v35
    %52 = vmatprep.subr.mxu0 0.0
    %53 = vmatpush1.msra.mxu0 %v36
    %54 = vmatprep.subr.mxu0 0.0
    %55 = vmatpush1.msra.mxu0 %v37
    %56 = vmatprep.subr.mxu0 0.0
    %57 = vmatpush1.msra.mxu0 %v38
    %58 = vmatprep.subr.mxu0 0.0
    %59 = vmatpush1.msra.mxu0 0.0
    %60 = vmatprep.subr.mxu0 0.0
    %61 = vmatpush1.msra.mxu0 0.0
    %62 = vmatprep.subr.mxu0 0.0
    %63 = vmatpush1.msra.mxu0 0.0
    %64 = vmatprep.subr.mxu0 0.0
    %65 = vmatpush1.msra.mxu0 0.0
    %66 = vmatprep.subr.mxu0 0.0
    %67 = vmatpush1.msra.mxu0 0.0
    %68 = vmatprep.subr.mxu0 0.0
    %69 = vmatpush1.msra.mxu0 0.0
    %70 = vmatprep.subr.mxu0 0.0
    %71 = vmatpush1.msra.mxu0 0.0
    %72 = vmatprep.subr.mxu0 0.0
    %73 = vmatpush1.msra.mxu0 0.0
    %74 = vmatprep.subr.mxu0 0.0
    %75 = vmatpush1.msra.mxu0 0.0
    %76 = vmatprep.subr.mxu0 0.0
    %77 = vmatpush1.msra.mxu0 0.0
    %78 = vmatprep.subr.mxu0 0.0
    %79 = vmatpush1.msra.mxu0 0.0
    %80 = vmatprep.subr.mxu0 0.0
    %81 = vmatpush1.msra.mxu0 0.0
    %82 = vmatprep.subr.mxu0 0.0
    %83 = vmatpush1.msra.mxu0 0.0
    %84 = vmatprep.subr.mxu0 0.0
    %85 = vmatpush1.msra.mxu0 0.0
    %86 = vmatprep.subr.mxu0 0.0
    %87 = vmatpush1.msra.mxu0 0.0
    %88 = vmatprep.subr.mxu0 0.0
    %89 = vmatpush1.msra.mxu0 0.0
    %90 = vmatprep.subr.mxu0 0.0
    %91 = vmatpush1.msra.mxu0 0.0
    %92 = vmatprep.subr.mxu0 0.0
    %93 = vmatpush1.msra.mxu0 0.0
    %94 = vmatprep.subr.mxu0 0.0
    %95 = vmatpush1.msra.mxu0 0.0
    %96 = vmatprep.subr.mxu0 0.0
    %97 = vmatpush1.msra.mxu0 0.0
    %98 = vmatprep.subr.mxu0 0.0
    %99 = vmatpush1.msra.mxu0 0.0
    %100 = vmatprep.subr.mxu0 0.0
    %101 = vmatpush1.msra.mxu0 0.0
    %102 = vmatprep.subr.mxu0 0.0
    %103 = vmatpush1.msra.mxu0 0.0
    %104 = vmatprep.subr.mxu0 0.0
    %105 = vmatpush1.msra.mxu0 0.0
    %106 = vmatprep.subr.mxu0 0.0
    %107 = vmatpush1.msra.mxu0 0.0
    %108 = vmatprep.subr.mxu0 0.0
    %109 = vmatpush1.msra.mxu0 0.0
    %110 = vmatprep.subr.mxu0 0.0
    %111 = vmatpush1.msra.mxu0 0.0
    %112 = vmatprep.subr.mxu0 0.0
    %113 = vmatpush1.msra.mxu0 0.0
    %114 = vmatprep.mubr.f32.mxu0 0.0
    %115 = vmatmul.mubr.f32.gmra.mrb[0].mxu0 %v48
    %v116 = vpop.f32.mrb[0].mxu0
    %v117 = vadd.f32 %v44, %v116
    %v118 = vpop.f32.mrb[0].mxu0
    %119 = vdwg.mxu0
    %v120 = vmax.f32 %v117, 0.0
    %v121 = vld [vmem:[%s4] sm:$0xff]
    %v122 = vld [vmem:[%s4 + $0x8] sm:$0xff]
    %v123 = vld [vmem:[%s4 + $0x10] sm:$0xff]
    %v124 = vld [vmem:[%s4 + $0x18] sm:$0xff]
    %v125 = vld [vmem:[%s4 + $0x20] sm:$0xff]
    %v126 = vld [vmem:[%s4 + $0x28] sm:$0xff]
    %v127 = vld [vmem:[%s4 + $0x30] sm:$0xff]
    %v128 = vld [vmem:[%s4 + $0x38] sm:$0xff]
    %v129 = vld [vmem:[%s4 + $0x40] sm:$0xff]
    %v130 = vld [vmem:[%s4 + $0x48] sm:$0xff]
    %v131 = vld [vmem:[%s4 + $0x50] sm:$0xff]
    %v132 = vld [vmem:[%s4 + $0x58] sm:$0xff]
    %v133 = vld [vmem:[%s4 + $0x60] sm:$0xff]
    %v134 = vld [vmem:[%s4 + $0x68] sm:$0xff]
    %v135 = vld [vmem:[%s4 + $0x70] sm:$0xff]
    %v136 = vld [vmem:[%s4 + $0x78] sm:$0xff]
    %v137 = vld [vmem:[%s5] sm:$0x1]
    %v139 = vlaneseq
    %v140 = vshrl.u32 %v139, 7
    %v141 = vsub.s32 0, %v140
    %v142 = vrot.slane %v137, %v141
    %144 = vmatprep.subr.mxu0 0.0
    %145 = vmatpush1.msra.mxu0 %v121
    %146 = vmatprep.subr.mxu0 0.0
    %147 = vmatpush1.msra.mxu0 %v122
    %148 = vmatprep.subr.mxu0 0.0
    %149 = vmatpush1.msra.mxu0 %v123
    %150 = vmatprep.subr.mxu0 0.0
    %151 = vmatpush1.msra.mxu0 %v124
    %152 = vmatprep.subr.mxu0 0.0
    %153 = vmatpush1.msra.mxu0 %v125
    %154 = vmatprep.subr.mxu0 0.0
    %155 = vmatpush1.msra.mxu0 %v126
    %156 = vmatprep.subr.mxu0 0.0
    %157 = vmatpush1.msra.mxu0 %v127
    %158 = vmatprep.subr.mxu0 0.0
    %159 = vmatpush1.msra.mxu0 %v128
    %160 = vmatprep.subr.mxu0 0.0
    %161 = vmatpush1.msra.mxu0 %v129
    %162 = vmatprep.subr.mxu0 0.0
    %163 = vmatpush1.msra.mxu0 %v130
    %164 = vmatprep.subr.mxu0 0.0
    %165 = vmatpush1.msra.mxu0 %v131
    %166 = vmatprep.subr.mxu0 0.0
    %167 = vmatpush1.msra.mxu0 %v132
    %168 = vmatprep.subr.mxu0 0.0
    %169 = vmatpush1.msra.mxu0 %v133
    %170 = vmatprep.subr.mxu0 0.0
    %171 = vmatpush1.msra.mxu0 %v134
    %172 = vmatprep.subr.mxu0 0.0
    %173 = vmatpush1.msra.mxu0 %v135
    %174 = vmatprep.subr.mxu0 0.0
    %175 = vmatpush1.msra.mxu0 %v136
    %176 = vmatprep.subr.mxu0 0.0
    %177 = vmatpush1.msra.mxu0 0.0
    %178 = vmatprep.subr.mxu0 0.0
    %179 = vmatpush1.msra.mxu0 0.0
    %180 = vmatprep.subr.mxu0 0.0
    %181 = vmatpush1.msra.mxu0 0.0
    %182 = vmatprep.subr.mxu0 0.0
    %183 = vmatpush1.msra.mxu0 0.0
    %184 = vmatprep.subr.mxu0 0.0
    %185 = vmatpush1.msra.mxu0 0.0
    %186 = vmatprep.subr.mxu0 0.0
    %187 = vmatpush1.msra.mxu0 0.0
    %188 = vmatprep.subr.mxu0 0.0
    %189 = vmatpush1.msra.mxu0 0.0
    %190 = vmatprep.subr.mxu0 0.0
    %191 = vmatpush1.msra.mxu0 0.0
    %192 = vmatprep.subr.mxu0 0.0
    %193 = vmatpush1.msra.mxu0 0.0
    %194 = vmatprep.subr.mxu0 0.0
    %195 = vmatpush1.msra.mxu0 0.0
    %196 = vmatprep.subr.mxu0 0.0
    %197 = vmatpush1.msra.mxu0 0.0
    %198 = vmatprep.subr.mxu0 0.0
    %199 = vmatpush1.msra.mxu0 0.0
    %200 = vmatprep.subr.mxu0 0.0
    %201 = vmatpush1.msra.mxu0 0.0
    %202 = vmatprep.subr.mxu0 0.0
    %203 = vmatpush1.msra.mxu0 0.0
    %204 = vmatprep.subr.mxu0 0.0
    %205 = vmatpush1.msra.mxu0 0.0
    %206 = vmatprep.subr.mxu0 0.0
    %207 = vmatpush1.msra.mxu0 0.0
    %208 = vmatprep.mubr.f32.mxu0 0.0
    %209 = vmatmul.mubr.f32.gmra.mrb[0].mxu0 %v120
    %v210 = vpop.f32.mrb[0].mxu0
    %v211 = vadd.f32 %v142, %v210
    %v212 = vpop.f32.mrb[0].mxu0
    %213 = vdwg.mxu0
    %v214 = vmax.f32 %v211, 0.0
    %v215 = vld [vmem:[%s6] sm:$0xff]
    %v216 = vld [vmem:[%s6 + $0x8] sm:$0xff]
    %v217 = vld [vmem:[%s6 + $0x10] sm:$0xff]
    %v218 = vld [vmem:[%s6 + $0x18] sm:$0xff]
    %v219 = vld [vmem:[%s6 + $0x20] sm:$0xff]
    %v220 = vld [vmem:[%s6 + $0x28] sm:$0xff]
    %v221 = vld [vmem:[%s6 + $0x30] sm:$0xff]
    %v222 = vld [vmem:[%s6 + $0x38] sm:$0xff]
    %v223 = vld [vmem:[%s7] sm:$0x1]
    %v225 = vlaneseq
    %v226 = vshrl.u32 %v225, 7
    %v227 = vsub.s32 0, %v226
    %v228 = vrot.slane %v223, %v227
    %vm230 = vcmask 523264
    %v232 = vsel %vm230, %v214, 0
    %234 = vmatprep.subr.mxu0 0.0
    %235 = vmatpush1.msra.mxu0 %v215
    %236 = vmatprep.subr.mxu0 0.0
    %237 = vmatpush1.msra.mxu0 %v216
    %238 = vmatprep.subr.mxu0 0.0
    %239 = vmatpush1.msra.mxu0 %v217
    %240 = vmatprep.subr.mxu0 0.0
    %241 = vmatpush1.msra.mxu0 %v218
    %242 = vmatprep.subr.mxu0 0.0
    %243 = vmatpush1.msra.mxu0 %v219
    %244 = vmatprep.subr.mxu0 0.0
    %245 = vmatpush1.msra.mxu0 %v220
    %246 = vmatprep.subr.mxu0 0.0
    %247 = vmatpush1.msra.mxu0 %v221
    %248 = vmatprep.subr.mxu0 0.0
    %249 = vmatpush1.msra.mxu0 %v222
    %250 = vmatprep.subr.mxu0 0.0
    %251 = vmatpush1.msra.mxu0 0.0
    %252 = vmatprep.subr.mxu0 0.0
    %253 = vmatpush1.msra.mxu0 0.0
    %254 = vmatprep.subr.mxu0 0.0
    %255 = vmatpush1.msra.mxu0 0.0
    %256 = vmatprep.subr.mxu0 0.0
    %257 = vmatpush1.msra.mxu0 0.0
    %258 = vmatprep.subr.mxu0 0.0
    %259 = vmatpush1.msra.mxu0 0.0
    %260 = vmatprep.subr.mxu0 0.0
    %261 = vmatpush1.msra.mxu0 0.0
    %262 = vmatprep.subr.mxu0 0.0
    %263 = vmatpush1.msra.mxu0 0.0
    %264 = vmatprep.subr.mxu0 0.0
    %265 = vmatpush1.msra.mxu0 0.0
    %266 = vmatprep.subr.mxu0 0.0
    %267 = vmatpush1.msra.mxu0 0.0
    %268 = vmatprep.subr.mxu0 0.0
    %269 = vmatpush1.msra.mxu0 0.0
    %270 = vmatprep.subr.mxu0 0.0
    %271 = vmatpush1.msra.mxu0 0.0
    %272 = vmatprep.subr.mxu0 0.0
    %273 = vmatpush1.msra.mxu0 0.0
    %274 = vmatprep.subr.mxu0 0.0
    %275 = vmatpush1.msra.mxu0 0.0
    %276 = vmatprep.subr.mxu0 0.0
    %277 = vmatpush1.msra.mxu0 0.0
    %278 = vmatprep.subr.mxu0 0.0
    %279 = vmatpush1.msra.mxu0 0.0
    %280 = vmatprep.subr.mxu0 0.0
    %281 = vmatpush1.msra.mxu0 0.0
    %282 = vmatprep.subr.mxu0 0.0
    %283 = vmatpush1.msra.mxu0 0.0
    %284 = vmatprep.subr.mxu0 0.0
    %285 = vmatpush1.msra.mxu0 0.0
    %286 = vmatprep.subr.mxu0 0.0
    %287 = vmatpush1.msra.mxu0 0.0
    %288 = vmatprep.subr.mxu0 0.0
    %289 = vmatpush1.msra.mxu0 0.0
    %290 = vmatprep.subr.mxu0 0.0
    %291 = vmatpush1.msra.mxu0 0.0
    %292 = vmatprep.subr.mxu0 0.0
    %293 = vmatpush1.msra.mxu0 0.0
    %294 = vmatprep.subr.mxu0 0.0
    %295 = vmatpush1.msra.mxu0 0.0
    %296 = vmatprep.subr.mxu0 0.0
    %297 = vmatpush1.msra.mxu0 0.0
    %298 = vmatprep.mubr.f32.mxu0 0.0
    %299 = vmatmul.mubr.f32.gmra.mrb[0].mxu0 %v232
    %v300 = vpop.f32.mrb[0].mxu0
    %v301 = vadd.f32 %v228, %v300
    %v302 = vpop.f32.mrb[0].mxu0
    %303 = vdwg.mxu0
    %v304 = vmax.f32 %v301, 0.0
    %v305 = vld [vmem:[%s8] sm:$0x1]
    %s306 = sld [smem:[#allocation2]]
    %v307 = vstv %s306
    %v309 = vsel %vm46, %v305, 0
    %v312 = vsel %vm46, %v304, 0
    %314 = vmatprep.subr.mxu0 0.0
    %315 = vmatpush1.xpose.msra.mxu0 %v312
    %316 = vmatprep.subr.mxu0 0.0
    %317 = vmatpush1.xpose.msra.mxu0 0.0
    %318 = vmatprep.subr.mxu0 0.0
    %319 = vmatpush1.xpose.msra.mxu0 0.0
    %320 = vmatprep.subr.mxu0 0.0
    %321 = vmatpush1.xpose.msra.mxu0 0.0
    %322 = vmatprep.subr.mxu0 0.0
    %323 = vmatpush1.xpose.msra.mxu0 0.0
    %324 = vmatprep.subr.mxu0 0.0
    %325 = vmatpush1.xpose.msra.mxu0 0.0
    %326 = vmatprep.subr.mxu0 0.0
    %327 = vmatpush1.xpose.msra.mxu0 0.0
    %328 = vmatprep.subr.mxu0 0.0
    %329 = vmatpush1.xpose.msra.mxu0 0.0
    %330 = vmatprep.subr.mxu0 0.0
    %331 = vmatpush1.xpose.msra.mxu0 0.0
    %332 = vmatprep.subr.mxu0 0.0
    %333 = vmatpush1.xpose.msra.mxu0 0.0
    %334 = vmatprep.subr.mxu0 0.0
    %335 = vmatpush1.xpose.msra.mxu0 0.0
    %336 = vmatprep.subr.mxu0 0.0
    %337 = vmatpush1.xpose.msra.mxu0 0.0
    %338 = vmatprep.subr.mxu0 0.0
    %339 = vmatpush1.xpose.msra.mxu0 0.0
    %340 = vmatprep.subr.mxu0 0.0
    %341 = vmatpush1.xpose.msra.mxu0 0.0
    %342 = vmatprep.subr.mxu0 0.0
    %343 = vmatpush1.xpose.msra.mxu0 0.0
    %344 = vmatprep.subr.mxu0 0.0
    %345 = vmatpush1.xpose.msra.mxu0 0.0
    %346 = vmatprep.subr.mxu0 0.0
    %347 = vmatpush1.xpose.msra.mxu0 0.0
    %348 = vmatprep.subr.mxu0 0.0
    %349 = vmatpush1.xpose.msra.mxu0 0.0
    %350 = vmatprep.subr.mxu0 0.0
    %351 = vmatpush1.xpose.msra.mxu0 0.0
    %352 = vmatprep.subr.mxu0 0.0
    %353 = vmatpush1.xpose.msra.mxu0 0.0
    %354 = vmatprep.subr.mxu0 0.0
    %355 = vmatpush1.xpose.msra.mxu0 0.0
    %356 = vmatprep.subr.mxu0 0.0
    %357 = vmatpush1.xpose.msra.mxu0 0.0
    %358 = vmatprep.subr.mxu0 0.0
    %359 = vmatpush1.xpose.msra.mxu0 0.0
    %360 = vmatprep.subr.mxu0 0.0
    %361 = vmatpush1.xpose.msra.mxu0 0.0
    %362 = vmatprep.subr.mxu0 0.0
    %363 = vmatpush1.xpose.msra.mxu0 0.0
    %364 = vmatprep.subr.mxu0 0.0
    %365 = vmatpush1.xpose.msra.mxu0 0.0
    %366 = vmatprep.subr.mxu0 0.0
    %367 = vmatpush1.xpose.msra.mxu0 0.0
    %368 = vmatprep.subr.mxu0 0.0
    %369 = vmatpush1.xpose.msra.mxu0 0.0
    %370 = vmatprep.subr.mxu0 0.0
    %371 = vmatpush1.xpose.msra.mxu0 0.0
    %372 = vmatprep.subr.mxu0 0.0
    %373 = vmatpush1.xpose.msra.mxu0 0.0
    %374 = vmatprep.subr.mxu0 0.0
    %375 = vmatpush1.xpose.msra.mxu0 0.0
    %376 = vmatprep.subr.mxu0 0.0
    %377 = vmatpush1.xpose.msra.mxu0 0.0
    %378 = vmatprep.mubr.f32.mxu0 0.0
    %379 = vmatmul.mubr.f32.gmra.mrb[0].mxu0 %v309
    %v380 = vpop.f32.mrb[0].mxu0
    %v381 = vadd.f32 %v307, %v380
    %v382 = vpop.f32.mrb[0].mxu0
    %383 = vdwg.mxu0
    %v384 = vxor.u32 %v381, 2147483648
    %v385 = vmul.f32 %v384, 1.442695
    %v386 = vpow.pop %v385
    %v387 = vadd.f32 %v386, 1.0
    %v388 = vrcp.pop %v387
    %v389 = vmul.f32 1.0, %v388
    %vm390 = vcmask 57344
    %391 = vst.msk [vmem:[#allocation3] sm:$0x1] %vm390, %v389
    // Predicated region
    $region38: #{tpu_custom_call.1} parent=1 // pred_check
      _
    $region39: #{tpu_custom_call.1} parent=1 // pred_check_branch
      %393 = sbr.rel (0) target = $region41
    $region40: #{tpu_custom_call.1} parent=1 // pred_region
      %s395 = ssub.s32 16, 16
      %396 = vsyncadd [#allocation4], %s395
      %s398 = sshll.u32 [#allocation3], 4
      %s399 = int_to_ptr.vmem [resolvable:$true] %s398
      %401 = dma.vmem_to_hbm [thread:$0]  %s399, 16, %s9, [#allocation4]
    $region41: #{tpu_custom_call.1} parent=1 // pred_fallthru
      _
    // Predicated region
    $region42: #{tpu_custom_call.1} parent=1 // pred_check
      _
    $region43: #{tpu_custom_call.1} parent=1 // pred_check_branch
      %403 = sbr.rel (0) target = $region45
    $region44: #{tpu_custom_call.1} parent=1 // pred_region
      %404 = dma.done [#allocation4], 16
    $region45: #{tpu_custom_call.1} parent=1 // pred_fallthru
      _
    %405 = vsyncpa [#allocation4], 1

</llo_original>
